<compile_context>
chip_gen: v5e
topology: v5e:2x2
jax: 0.10.0
libtpu: 0.0.40
codegen_flags: <defaults>
</compile_context>

<pallas_src>
import functools

import jax
import jax.numpy as jnp
from jax.experimental import pallas as pl
from jax.experimental.pallas import tpu as pltpu

D = 512                       # shared embedding width (MobileOne / CLIP pooler)
HEAD_DIMS = (4, 4, 4, 2, 5)   # humour, sarcasm, offensive, motivational, overall
N_TOTAL = sum(HEAD_DIMS)      # 19
N_PAD = 128                   # pad head outputs to one full lane width
SUBLANE = 16                  # bf16 sublane packing -> pad batch to multiples of 16
TB_MAX = 1024                 # max batch-tile rows (safe on v5e/v6e/v7x)


def _round_up(x, m):
    return ((x + m - 1) // m) * m


def _fusion_heads_kernel(alpha_ref, img_ref, txt_ref, w_ref, b_ref, out_ref):
    """alpha_ref: SMEM (2,) f32 = [alpha_img, alpha_txt]  (scalar-prefetched)
    img_ref/txt_ref: VMEM (TB, 512) bf16 tiles of the encoder outputs
    w_ref: VMEM (512, 128) bf16 concatenated+padded head weights (resident)
    b_ref: VMEM (1, 128)   f32 concatenated+padded head biases  (resident)
    out_ref: VMEM (TB, 128) f32 concatenated, zero-padded head logits."""
    a_img = alpha_ref[0]
    a_txt = alpha_ref[1]
    # wt_emb = alpha_txt * txt_pooled + alpha_img * img_out
    # Blend in f32 on the VPU (v5e has no native bf16 VALU), then feed the MXU
    # in bf16 with an f32 accumulator.
    wt_f32 = (a_txt * txt_ref[...].astype(jnp.float32)
              + a_img * img_ref[...].astype(jnp.float32))
    out_ref[...] = (
        jnp.dot(wt_f32.astype(jnp.bfloat16), w_ref[...],
                preferred_element_type=jnp.float32)
        + b_ref[...]
    )


@functools.partial(jax.jit, static_argnames=("tb",))
def memotion_forward(alphas, img_feat, txt_feat, w_cat, b_cat, *, tb=TB_MAX):
    """Fused task=3 forward.

    alphas: (2,) f32 [alpha_img, alpha_txt]
    img_feat, txt_feat: (B, 512) f32 encoder outputs
    w_cat: (512, 128) f32 concatenated+padded head weights
    b_cat: (1, 128)   f32 concatenated+padded head biases

    Returns packed logits of shape (B, 19) = concat of the 5 heads along the
    last axis (use `split_heads` for the original 5-tuple API)."""
    B = img_feat.shape[0]

    # Pad the batch to a sublane multiple, then to a multiple of the tile.
    b_pad = _round_up(max(B, 1), SUBLANE)
    tile_b = min(tb, b_pad)
    b_pad = _round_up(b_pad, tile_b)
    pad_rows = b_pad - B

    # Mem-bound op: move activations + weights to bf16 (halves DMA bytes).
    img16 = jnp.pad(img_feat, ((0, pad_rows), (0, 0))).astype(jnp.bfloat16)
    txt16 = jnp.pad(txt_feat, ((0, pad_rows), (0, 0))).astype(jnp.bfloat16)
    w16 = w_cat.astype(jnp.bfloat16)
    b32 = b_cat.astype(jnp.float32)

    grid = (b_pad // tile_b,)

    grid_spec = pltpu.PrefetchScalarGridSpec(
        num_scalar_prefetch=1,                      # alphas -> SMEM
        grid=grid,
        in_specs=[
            pl.BlockSpec((tile_b, D), lambda i, alphas: (i, 0)),     # img tile
            pl.BlockSpec((tile_b, D), lambda i, alphas: (i, 0)),     # txt tile
            pl.BlockSpec((D, N_PAD), lambda i, alphas: (0, 0)),      # weights (resident)
            pl.BlockSpec((1, N_PAD), lambda i, alphas: (0, 0)),      # bias    (resident)
        ],
        out_specs=pl.BlockSpec((tile_b, N_PAD), lambda i, alphas: (i, 0)),
    )

    bytes_accessed = (2 * b_pad * D * 2            # bf16 activations in
                      + D * N_PAD * 2              # bf16 weights in
                      + N_PAD * 4                  # f32 bias in
                      + b_pad * N_PAD * 4)         # f32 logits out
    cost = pl.CostEstimate(flops=2 * b_pad * D * N_PAD,
                           transcendentals=0,
                           bytes_accessed=bytes_accessed)

    out_padded = pl.pallas_call(
        _fusion_heads_kernel,
        out_shape=jax.ShapeDtypeStruct((b_pad, N_PAD), jnp.float32),
        grid_spec=grid_spec,
        compiler_params=pltpu.CompilerParams(
            dimension_semantics=("parallel",)),
        cost_estimate=cost,
    )(alphas, img16, txt16, w16, b32)

    # Single slice back to the real batch / real output columns; keep packed.
    return out_padded[:B, :N_TOTAL]


def split_heads(packed):
    """Optional: split packed (B, 19) logits into the PyTorch-style 5-tuple.
    (Kept out of the hot path -- consumers should prefer the packed slab.)"""
    outs, off = [], 0
    for n in HEAD_DIMS:
        outs.append(packed[:, off:off + n])
        off += n
    return tuple(outs)


def init_params(key):
    """Deterministic parameter init mirroring the PyTorch module's __init__."""
    keys = jax.random.split(key, 2 + 2 * len(HEAD_DIMS))
    # alpha_img, alpha_txt ~ torch.randn(size=(1,))
    alpha_img = jax.random.normal(keys[0], (1,), jnp.float32)
    alpha_txt = jax.random.normal(keys[1], (1,), jnp.float32)
    alphas = jnp.concatenate([alpha_img, alpha_txt]).astype(jnp.float32)

    # nn.Linear(512, n): W ~ U(-k, k), b ~ U(-k, k), k = 1/sqrt(512)
    k = 1.0 / jnp.sqrt(jnp.float32(D))
    w_blocks, b_blocks = [], []
    for i, n in enumerate(HEAD_DIMS):
        wk = keys[2 + 2 * i]
        bk = keys[3 + 2 * i]
        w_blocks.append(jax.random.uniform(wk, (D, n), jnp.float32, -k, k))
        b_blocks.append(jax.random.uniform(bk, (n,), jnp.float32, -k, k))
    w_cat = jnp.concatenate(w_blocks, axis=1)                 # (512, 19)
    b_cat = jnp.concatenate(b_blocks, axis=0)                 # (19,)
    # zero-pad the output dim to 128 lanes for an unmasked, lane-dense store
    w_cat = jnp.pad(w_cat, ((0, 0), (0, N_PAD - N_TOTAL)))
    b_cat = jnp.pad(b_cat, (0, N_PAD - N_TOTAL)).reshape(1, N_PAD)
    return alphas, w_cat, b_cat


def reference_forward(alphas, img_feat, txt_feat, w_cat, b_cat):
    """Pure-JAX reference of the task=3 forward, mirroring the kernel's
    bf16 input / f32 blend / bf16 matmul / f32 accumulate numerics."""
    img16 = img_feat.astype(jnp.bfloat16).astype(jnp.float32)
    txt16 = txt_feat.astype(jnp.bfloat16).astype(jnp.float32)
    wt_emb = alphas[1] * txt16 + alphas[0] * img16
    full = jnp.dot(wt_emb.astype(jnp.bfloat16),
                   w_cat.astype(jnp.bfloat16)[:, :N_TOTAL],
                   preferred_element_type=jnp.float32) + b_cat[0, :N_TOTAL]
    return full


if __name__ == "__main__":
    key = jax.random.PRNGKey(0)
    k_param, k_img, k_txt = jax.random.split(key, 3)

    alphas, w_cat, b_cat = init_params(k_param)

    # --- small-shape check (B=2, single grid step) -------------------------
    B = 2
    # stand-ins for the encoder outputs:
    #   img_feat = MobileOne(image)                   -> (B, 512)
    #   txt_feat = CLIPTextModel(...).pooler_output   -> (B, 512)
    img_feat = jax.random.normal(k_img, (B, D), jnp.float32)
    txt_feat = jax.random.normal(k_txt, (B, D), jnp.float32)

    packed = memotion_forward(alphas, img_feat, txt_feat, w_cat, b_cat)
    packed = jax.block_until_ready(packed)
    ref = reference_forward(alphas, img_feat, txt_feat, w_cat, b_cat)
    assert packed.shape == (B, N_TOTAL), packed.shape
    assert jnp.allclose(packed, ref, atol=1e-2, rtol=1e-2), "mismatch vs reference"

    heads = split_heads(packed)
    for h, n in zip(heads, HEAD_DIMS):
        assert h.shape == (B, n), (h.shape, n)

    # --- multi-tile check (exercises the batch grid / pipelining) ----------
    B2 = 40
    k_img2, k_txt2 = jax.random.split(jax.random.PRNGKey(1), 2)
    img2 = jax.random.normal(k_img2, (B2, D), jnp.float32)
    txt2 = jax.random.normal(k_txt2, (B2, D), jnp.float32)
    packed2 = memotion_forward(alphas, img2, txt2, w_cat, b_cat, tb=16)
    packed2 = jax.block_until_ready(packed2)
    ref2 = reference_forward(alphas, img2, txt2, w_cat, b_cat)
    assert packed2.shape == (B2, N_TOTAL), packed2.shape
    assert jnp.allclose(packed2, ref2, atol=1e-2, rtol=1e-2), "mismatch vs reference (tiled)"

    print("KERNEL_OK")
</pallas_src>

<mosaic_0001>
module attributes {stable_mosaic.version = 11 : i64} {
  func.func @_fusion_heads_kernel(%arg0: i32, %arg1: memref<2xf32, #tpu.memory_space<smem>>, %arg2: memref<16x512xbf16, #tpu.memory_space<vmem>>, %arg3: memref<16x512xbf16, #tpu.memory_space<vmem>>, %arg4: memref<512x128xbf16, #tpu.memory_space<vmem>>, %arg5: memref<1x128xf32, #tpu.memory_space<vmem>>, %arg6: memref<16x128xf32, #tpu.memory_space<vmem>>) attributes {dimension_semantics = [#tpu.dimension_semantics<parallel>], iteration_bounds = array<i64: 1>, scalar_prefetch = 1 : i64, scratch_operands = 0 : i64, tpu.core_type = #tpu.core_type<tc>, window_params = [{transform_indices = @transform_0, window_bounds = array<i64: 16, 512>}, {transform_indices = @transform_1, window_bounds = array<i64: 16, 512>}, {pipeline_mode = #tpu.pipeline_mode<synchronous>, transform_indices = @transform_2, window_bounds = array<i64: 512, 128>}, {pipeline_mode = #tpu.pipeline_mode<synchronous>, transform_indices = @transform_3, window_bounds = array<i64: 1, 128>}, {transform_indices = @transform_4, window_bounds = array<i64: 16, 128>}]} {
    %c0 = arith.constant 0 : index
    %0 = memref.load %arg1[%c0] : memref<2xf32, #tpu.memory_space<smem>>
    %c1 = arith.constant 1 : index
    %1 = memref.load %arg1[%c1] : memref<2xf32, #tpu.memory_space<smem>>
    %c0_0 = arith.constant 0 : index
    %c0_1 = arith.constant 0 : index
    %2 = vector.load %arg3[%c0_0, %c0_1] : memref<16x512xbf16, #tpu.memory_space<vmem>>, vector<16x512xbf16>
    %3 = arith.extf %2 : vector<16x512xbf16> to vector<16x512xf32>
    %4 = vector.broadcast %1 : f32 to vector<16x512xf32>
    %5 = arith.mulf %4, %3 : vector<16x512xf32>
    %c0_2 = arith.constant 0 : index
    %c0_3 = arith.constant 0 : index
    %6 = vector.load %arg2[%c0_2, %c0_3] : memref<16x512xbf16, #tpu.memory_space<vmem>>, vector<16x512xbf16>
    %7 = arith.extf %6 : vector<16x512xbf16> to vector<16x512xf32>
    %8 = vector.broadcast %0 : f32 to vector<16x512xf32>
    %9 = arith.mulf %8, %7 : vector<16x512xf32>
    %10 = arith.addf %5, %9 : vector<16x512xf32>
    %11 = arith.truncf %10 : vector<16x512xf32> to vector<16x512xbf16>
    %c0_4 = arith.constant 0 : index
    %c0_5 = arith.constant 0 : index
    %12 = vector.load %arg4[%c0_4, %c0_5] : memref<512x128xbf16, #tpu.memory_space<vmem>>, vector<512x128xbf16>
    %cst = arith.constant dense<0.000000e+00> : vector<16x128xf32>
    %13 = tpu.matmul %11, %12, %cst {dimension_numbers = #tpu.dot_dimension_numbers<[1], [0], [0], [1], [0, 0, 1, 1], [], []>} : vector<16x512xbf16>, vector<512x128xbf16>, vector<16x128xf32> -> vector<16x128xf32>
    %c0_6 = arith.constant 0 : index
    %c0_7 = arith.constant 0 : index
    %14 = vector.load %arg5[%c0_6, %c0_7] : memref<1x128xf32, #tpu.memory_space<vmem>>, vector<1x128xf32>
    %15 = vector.broadcast %14 : vector<1x128xf32> to vector<16x128xf32>
    %16 = arith.addf %13, %15 : vector<16x128xf32>
    %c0_8 = arith.constant 0 : index
    %c0_9 = arith.constant 0 : index
    %17 = vector.load %arg6[%c0_8, %c0_9] : memref<16x128xf32, #tpu.memory_space<vmem>>, vector<16x128xf32>
    tpu.vector_store %arg6[%c0_8, %c0_9], %16 {strides = array<i32>} : memref<16x128xf32, #tpu.memory_space<vmem>>, vector<16x128xf32>,
    return
  }
  func.func @transform_0(%arg0: i32, %arg1: memref<2xf32, #tpu.memory_space<smem>>) -> (i32, i32) {
    %c0_i32 = arith.constant 0 : i32
    %c0_i32_0 = arith.constant 0 : i32
    return %arg0, %c0_i32 : i32, i32
  }
  func.func @transform_1(%arg0: i32, %arg1: memref<2xf32, #tpu.memory_space<smem>>) -> (i32, i32) {
    %c0_i32 = arith.constant 0 : i32
    %c0_i32_0 = arith.constant 0 : i32
    return %arg0, %c0_i32 : i32, i32
  }
  func.func @transform_2(%arg0: i32, %arg1: memref<2xf32, #tpu.memory_space<smem>>) -> (i32, i32) {
    %c0_i32 = arith.constant 0 : i32
    %c0_i32_0 = arith.constant 0 : i32
    %c0_i32_1 = arith.constant 0 : i32
    return %c0_i32, %c0_i32_0 : i32, i32
  }
  func.func @transform_3(%arg0: i32, %arg1: memref<2xf32, #tpu.memory_space<smem>>) -> (i32, i32) {
    %c0_i32 = arith.constant 0 : i32
    %c0_i32_0 = arith.constant 0 : i32
    %c0_i32_1 = arith.constant 0 : i32
    return %c0_i32, %c0_i32_0 : i32, i32
  }
  func.func @transform_4(%arg0: i32, %arg1: memref<2xf32, #tpu.memory_space<smem>>) -> (i32, i32) {
    %c0_i32 = arith.constant 0 : i32
    %c0_i32_0 = arith.constant 0 : i32
    return %arg0, %c0_i32 : i32, i32
  }
}

</mosaic_0001>

<llo_original>
// kernel: memotion_forward.1
$region0: #{memotion_forward.1}
  #allocation0 [shape = 'u32[]', space=smem, size = 0x4, offset = 0x4, fixed_abs, tag = 'smem constant byte address 0x4 - core index']
  #allocation1 [shape = 'u32[72,128]{1,0:T(1,128)}', space=vmem, size = 0x9000, scoped, tag = 'internal scratch']
  #allocation2 [shape = 's32[1]{0}', space=sflag, size = 0x4, scoped, tag = 'scoped memory for memotion_forward.1']
  #allocation3 [shape = 'u8[512]{0}', space=smem, size = 0x200, scoped, tag = 'prefetched SMEM operand 0']
  %s0 = inlined_call_operand.vmem [shape: f32[2], index: 0, kind: input, shape index: {}]
  %s1 = inlined_call_operand.vmem [shape: bf16[16,512], index: 1, kind: input, shape index: {}]
  %s2 = inlined_call_operand.vmem [shape: bf16[16,512], index: 2, kind: input, shape index: {}]
  %s3 = inlined_call_operand.vmem [shape: bf16[512,128], index: 3, kind: input, shape index: {}]
  %s4 = inlined_call_operand.vmem [shape: f32[1,128], index: 4, kind: input, shape index: {}]
  %s5 = inlined_call_operand.vmem [shape: f32[16,128], index: 5, kind: output, shape index: {}]
  %s6 = sld [smem:[#allocation0]]
  $region26: #{memotion_forward.1} parent=0
    _
  %s8 = ssub.s32 1, %s6
  %s9 = scalar_select 0, %s8, %s6
  %s11 = sshll.u32 %s0, 4
  %s12 = int_to_ptr.vmem [resolvable:$true] %s11
  %14 = dma.vmem_to_smem %s12, 16, [#allocation3], [#allocation2]
  %16 = dma.done [#allocation2], 16
  %17 = sfence
  // Predicated region
  $region2: #{memotion_forward.1} parent=0 // pred_check
    _
  $region3: #{memotion_forward.1} parent=0 // pred_check_branch
    %19 = sbr.rel (0) target = $region5
  $region4: #{memotion_forward.1} parent=0 // pred_region
    _
  $region5: #{memotion_forward.1} parent=0 // pred_fallthru
    _
  // Predicated region
  $region6: #{memotion_forward.1} parent=0 // pred_check
    _
  $region7: #{memotion_forward.1} parent=0 // pred_check_branch
    %21 = sbr.rel (0) target = $region9
  $region8: #{memotion_forward.1} parent=0 // pred_region
    _
  $region9: #{memotion_forward.1} parent=0 // pred_fallthru
    _
  // Predicated region
  $region10: #{memotion_forward.1} parent=0 // pred_check
    _
  $region11: #{memotion_forward.1} parent=0 // pred_check_branch
    %23 = sbr.rel (0) target = $region13
  $region12: #{memotion_forward.1} parent=0 // pred_region
    _
  $region13: #{memotion_forward.1} parent=0 // pred_fallthru
    _
  // Predicated region
  $region14: #{memotion_forward.1} parent=0 // pred_check
    _
  $region15: #{memotion_forward.1} parent=0 // pred_check_branch
    %25 = sbr.rel (0) target = $region17
  $region16: #{memotion_forward.1} parent=0 // pred_region
    _
  $region17: #{memotion_forward.1} parent=0 // pred_fallthru
    _
  %s26 = sld [smem:[#allocation3]]
  %s27 = sld [smem:[#allocation3 + $0x1]]
  %v28 = vld [vmem:[%s2] sm:$0xff]
  %v29 = vld [vmem:[%s2 + $0x8] sm:$0xff]
  %v30 = vld [vmem:[%s2 + $0x10] sm:$0xff]
  %v31 = vld [vmem:[%s2 + $0x18] sm:$0xff]
  %v32 = vunpack.c.l.bf16 %v28
  %v33 = vunpack.c.h.bf16 %v28
  %v34 = vunpack.c.l.bf16 %v29
  %v35 = vunpack.c.h.bf16 %v29
  %v36 = vunpack.c.l.bf16 %v30
  %v37 = vunpack.c.h.bf16 %v30
  %v38 = vunpack.c.l.bf16 %v31
  %v39 = vunpack.c.h.bf16 %v31
  %v40 = vstv %s27
  %v41 = vmul.f32 %v40, %v32
  %v42 = vmul.f32 %v40, %v33
  %v43 = vmul.f32 %v40, %v34
  %v44 = vmul.f32 %v40, %v35
  %v45 = vmul.f32 %v40, %v36
  %v46 = vmul.f32 %v40, %v37
  %v47 = vmul.f32 %v40, %v38
  %v48 = vmul.f32 %v40, %v39
  %v49 = vld [vmem:[%s1] sm:$0xff]
  %v50 = vld [vmem:[%s1 + $0x8] sm:$0xff]
  %v51 = vld [vmem:[%s1 + $0x10] sm:$0xff]
  %v52 = vld [vmem:[%s1 + $0x18] sm:$0xff]
  %v53 = vunpack.c.l.bf16 %v49
  %v54 = vunpack.c.h.bf16 %v49
  %v55 = vunpack.c.l.bf16 %v50
  %v56 = vunpack.c.h.bf16 %v50
  %v57 = vunpack.c.l.bf16 %v51
  %v58 = vunpack.c.h.bf16 %v51
  %v59 = vunpack.c.l.bf16 %v52
  %v60 = vunpack.c.h.bf16 %v52
  %v61 = vstv %s26
  %v62 = vmul.f32 %v61, %v53
  %v63 = vmul.f32 %v61, %v54
  %v64 = vmul.f32 %v61, %v55
  %v65 = vmul.f32 %v61, %v56
  %v66 = vmul.f32 %v61, %v57
  %v67 = vmul.f32 %v61, %v58
  %v68 = vmul.f32 %v61, %v59
  %v69 = vmul.f32 %v61, %v60
  %v70 = vadd.f32 %v41, %v62
  %v71 = vadd.f32 %v42, %v63
  %v72 = vadd.f32 %v43, %v64
  %v73 = vadd.f32 %v44, %v65
  %v74 = vadd.f32 %v45, %v66
  %v75 = vadd.f32 %v46, %v67
  %v76 = vadd.f32 %v47, %v68
  %v77 = vadd.f32 %v48, %v69
  %v78 = vpack.c.bf16 %v74, %v70
  %v79 = vpack.c.bf16 %v75, %v71
  %v80 = vpack.c.bf16 %v76, %v72
  %v81 = vpack.c.bf16 %v77, %v73
  %v82 = vld [vmem:[%s3] sm:$0xf]
  %v83 = vld [vmem:[%s3 + $0x4] sm:$0xf]
  %v84 = vld [vmem:[%s3 + $0x8] sm:$0xf]
  %v85 = vld [vmem:[%s3 + $0xc] sm:$0xf]
  %v86 = vld [vmem:[%s3 + $0x10] sm:$0xf]
  %v87 = vld [vmem:[%s3 + $0x14] sm:$0xf]
  %v88 = vld [vmem:[%s3 + $0x18] sm:$0xf]
  %v89 = vld [vmem:[%s3 + $0x1c] sm:$0xf]
  %v90 = vld [vmem:[%s3 + $0x20] sm:$0xf]
  %v91 = vld [vmem:[%s3 + $0x24] sm:$0xf]
  %v92 = vld [vmem:[%s3 + $0x28] sm:$0xf]
  %v93 = vld [vmem:[%s3 + $0x2c] sm:$0xf]
  %v94 = vld [vmem:[%s3 + $0x30] sm:$0xf]
  %v95 = vld [vmem:[%s3 + $0x34] sm:$0xf]
  %v96 = vld [vmem:[%s3 + $0x38] sm:$0xf]
  %v97 = vld [vmem:[%s3 + $0x3c] sm:$0xf]
  %v98 = vld [vmem:[%s3 + $0x40] sm:$0xf]
  %v99 = vld [vmem:[%s3 + $0x44] sm:$0xf]
  %v100 = vld [vmem:[%s3 + $0x48] sm:$0xf]
  %v101 = vld [vmem:[%s3 + $0x4c] sm:$0xf]
  %v102 = vld [vmem:[%s3 + $0x50] sm:$0xf]
  %v103 = vld [vmem:[%s3 + $0x54] sm:$0xf]
  %v104 = vld [vmem:[%s3 + $0x58] sm:$0xf]
  %v105 = vld [vmem:[%s3 + $0x5c] sm:$0xf]
  %v106 = vld [vmem:[%s3 + $0x60] sm:$0xf]
  %v107 = vld [vmem:[%s3 + $0x64] sm:$0xf]
  %v108 = vld [vmem:[%s3 + $0x68] sm:$0xf]
  %v109 = vld [vmem:[%s3 + $0x6c] sm:$0xf]
  %v110 = vld [vmem:[%s3 + $0x70] sm:$0xf]
  %v111 = vld [vmem:[%s3 + $0x74] sm:$0xf]
  %v112 = vld [vmem:[%s3 + $0x78] sm:$0xf]
  %v113 = vld [vmem:[%s3 + $0x7c] sm:$0xf]
  %v114 = vld [vmem:[%s3 + $0x80] sm:$0xf]
  %v115 = vld [vmem:[%s3 + $0x84] sm:$0xf]
  %v116 = vld [vmem:[%s3 + $0x88] sm:$0xf]
  %v117 = vld [vmem:[%s3 + $0x8c] sm:$0xf]
  %v118 = vld [vmem:[%s3 + $0x90] sm:$0xf]
  %v119 = vld [vmem:[%s3 + $0x94] sm:$0xf]
  %v120 = vld [vmem:[%s3 + $0x98] sm:$0xf]
  %v121 = vld [vmem:[%s3 + $0x9c] sm:$0xf]
  %v122 = vld [vmem:[%s3 + $0xa0] sm:$0xf]
  %v123 = vld [vmem:[%s3 + $0xa4] sm:$0xf]
  %v124 = vld [vmem:[%s3 + $0xa8] sm:$0xf]
  %v125 = vld [vmem:[%s3 + $0xac] sm:$0xf]
  %v126 = vld [vmem:[%s3 + $0xb0] sm:$0xf]
  %v127 = vld [vmem:[%s3 + $0xb4] sm:$0xf]
  %v128 = vld [vmem:[%s3 + $0xb8] sm:$0xf]
  %v129 = vld [vmem:[%s3 + $0xbc] sm:$0xf]
  %v130 = vld [vmem:[%s3 + $0xc0] sm:$0xf]
  %v131 = vld [vmem:[%s3 + $0xc4] sm:$0xf]
  %v132 = vld [vmem:[%s3 + $0xc8] sm:$0xf]
  %v133 = vld [vmem:[%s3 + $0xcc] sm:$0xf]
  %v134 = vld [vmem:[%s3 + $0xd0] sm:$0xf]
  %v135 = vld [vmem:[%s3 + $0xd4] sm:$0xf]
  %v136 = vld [vmem:[%s3 + $0xd8] sm:$0xf]
  %v137 = vld [vmem:[%s3 + $0xdc] sm:$0xf]
  %v138 = vld [vmem:[%s3 + $0xe0] sm:$0xf]
  %v139 = vld [vmem:[%s3 + $0xe4] sm:$0xf]
  %v140 = vld [vmem:[%s3 + $0xe8] sm:$0xf]
  %v141 = vld [vmem:[%s3 + $0xec] sm:$0xf]
  %v142 = vld [vmem:[%s3 + $0xf0] sm:$0xf]
  %v143 = vld [vmem:[%s3 + $0xf4] sm:$0xf]
  %v144 = vld [vmem:[%s3 + $0xf8] sm:$0xf]
  %v145 = vld [vmem:[%s3 + $0xfc] sm:$0xf]
  %v146 = vld [vmem:[%s4] sm:$0x1]
  %v148 = vperm.slane %v146, 0
  %v214 = vunpack.c.l.b16 %v82
  %v215 = vunpack.c.l.b16 %v83
  %v216 = vunpack.c.l.b16 %v84
  %v217 = vunpack.c.l.b16 %v85
  %v218 = vunpack.c.l.b16 %v86
  %v219 = vunpack.c.l.b16 %v87
  %v220 = vunpack.c.l.b16 %v88
  %v221 = vunpack.c.l.b16 %v89
  %v222 = vunpack.c.l.b16 %v90
  %v223 = vunpack.c.l.b16 %v91
  %v224 = vunpack.c.l.b16 %v92
  %v225 = vunpack.c.l.b16 %v93
  %v226 = vunpack.c.l.b16 %v94
  %v227 = vunpack.c.l.b16 %v95
  %v228 = vunpack.c.l.b16 %v96
  %v229 = vunpack.c.l.b16 %v97
  %v230 = vunpack.c.l.b16 %v98
  %v231 = vunpack.c.l.b16 %v99
  %v232 = vunpack.c.l.b16 %v100
  %v233 = vunpack.c.l.b16 %v101
  %v234 = vunpack.c.l.b16 %v102
  %v235 = vunpack.c.l.b16 %v103
  %v236 = vunpack.c.l.b16 %v104
  %v237 = vunpack.c.l.b16 %v105
  %v238 = vunpack.c.l.b16 %v106
  %v239 = vunpack.c.l.b16 %v107
  %v240 = vunpack.c.l.b16 %v108
  %v241 = vunpack.c.l.b16 %v109
  %v242 = vunpack.c.l.b16 %v110
  %v243 = vunpack.c.l.b16 %v111
  %v244 = vunpack.c.l.b16 %v112
  %v245 = vunpack.c.l.b16 %v113
  %v246 = vunpack.c.l.b16 %v114
  %v247 = vunpack.c.l.b16 %v115
  %v248 = vunpack.c.l.b16 %v116
  %v249 = vunpack.c.l.b16 %v117
  %v250 = vunpack.c.l.b16 %v118
  %v251 = vunpack.c.l.b16 %v119
  %v252 = vunpack.c.l.b16 %v120
  %v253 = vunpack.c.l.b16 %v121
  %v254 = vunpack.c.l.b16 %v122
  %v255 = vunpack.c.l.b16 %v123
  %v256 = vunpack.c.l.b16 %v124
  %v257 = vunpack.c.l.b16 %v125
  %v258 = vunpack.c.l.b16 %v126
  %v259 = vunpack.c.l.b16 %v127
  %v260 = vunpack.c.l.b16 %v128
  %v261 = vunpack.c.l.b16 %v129
  %v262 = vunpack.c.l.b16 %v130
  %v263 = vunpack.c.l.b16 %v131
  %v264 = vunpack.c.l.b16 %v132
  %v265 = vunpack.c.l.b16 %v133
  %v266 = vunpack.c.l.b16 %v134
  %v267 = vunpack.c.l.b16 %v135
  %v268 = vunpack.c.l.b16 %v136
  %v269 = vunpack.c.l.b16 %v137
  %v270 = vunpack.c.l.b16 %v138
  %v271 = vunpack.c.l.b16 %v139
  %v272 = vunpack.c.l.b16 %v140
  %v273 = vunpack.c.l.b16 %v141
  %v274 = vunpack.c.l.b16 %v142
  %v275 = vunpack.c.l.b16 %v143
  %v276 = vunpack.c.l.b16 %v144
  %v277 = vunpack.c.l.b16 %v145
  %v278 = vpack.c.b16 %v215, %v214
  %v279 = vpack.c.b16 %v217, %v216
  %v280 = vpack.c.b16 %v219, %v218
  %v281 = vpack.c.b16 %v221, %v220
  %v282 = vpack.c.b16 %v223, %v222
  %v283 = vpack.c.b16 %v225, %v224
  %v284 = vpack.c.b16 %v227, %v226
  %v285 = vpack.c.b16 %v229, %v228
  %v286 = vpack.c.b16 %v231, %v230
  %v287 = vpack.c.b16 %v233, %v232
  %v288 = vpack.c.b16 %v235, %v234
  %v289 = vpack.c.b16 %v237, %v236
  %v290 = vpack.c.b16 %v239, %v238
  %v291 = vpack.c.b16 %v241, %v240
  %v292 = vpack.c.b16 %v243, %v242
  %v293 = vpack.c.b16 %v245, %v244
  %v294 = vpack.c.b16 %v247, %v246
  %v295 = vpack.c.b16 %v249, %v248
  %v296 = vpack.c.b16 %v251, %v250
  %v297 = vpack.c.b16 %v253, %v252
  %v298 = vpack.c.b16 %v255, %v254
  %v299 = vpack.c.b16 %v257, %v256
  %v300 = vpack.c.b16 %v259, %v258
  %v301 = vpack.c.b16 %v261, %v260
  %v302 = vpack.c.b16 %v263, %v262
  %v303 = vpack.c.b16 %v265, %v264
  %v304 = vpack.c.b16 %v267, %v266
  %v305 = vpack.c.b16 %v269, %v268
  %v306 = vpack.c.b16 %v271, %v270
  %v307 = vpack.c.b16 %v273, %v272
  %v308 = vpack.c.b16 %v275, %v274
  %v309 = vpack.c.b16 %v277, %v276
  %342 = vmatpush.bf16.msra.mxu0 %v285
  %343 = vmatpush.bf16.msra.mxu0 %v284
  %344 = vmatpush.bf16.msra.mxu0 %v283
  %345 = vmatpush.bf16.msra.mxu0 %v282
  %346 = vmatpush.bf16.msra.mxu0 %v281
  %347 = vmatpush.bf16.msra.mxu0 %v280
  %348 = vmatpush.bf16.msra.mxu0 %v279
  %349 = vmatpush.bf16.msra.mxu0 %v278
  %350 = vmatmul.bf16.gmra.mxu0 %v78
  %v351 = vpop.f32.mrf.mxu0
  %v352 = vadd.f32 %v148, %v351
  %v353 = vpop.f32.mrf.mxu0
  %v354 = vadd.f32 %v148, %v353
  %355 = vdwg.mxu0
  %356 = vmatpush.bf16.msra.mxu0 %v293
  %357 = vmatpush.bf16.msra.mxu0 %v292
  %358 = vmatpush.bf16.msra.mxu0 %v291
  %359 = vmatpush.bf16.msra.mxu0 %v290
  %360 = vmatpush.bf16.msra.mxu0 %v289
  %361 = vmatpush.bf16.msra.mxu0 %v288
  %362 = vmatpush.bf16.msra.mxu0 %v287
  %363 = vmatpush.bf16.msra.mxu0 %v286
  %364 = vmatmul.bf16.gmra.mxu0 %v79
  %v365 = vpop.f32.mrf.mxu0
  %v366 = vadd.f32 %v352, %v365
  %v367 = vpop.f32.mrf.mxu0
  %v368 = vadd.f32 %v354, %v367
  %369 = vdwg.mxu0
  %370 = vmatpush.bf16.msra.mxu0 %v301
  %371 = vmatpush.bf16.msra.mxu0 %v300
  %372 = vmatpush.bf16.msra.mxu0 %v299
  %373 = vmatpush.bf16.msra.mxu0 %v298
  %374 = vmatpush.bf16.msra.mxu0 %v297
  %375 = vmatpush.bf16.msra.mxu0 %v296
  %376 = vmatpush.bf16.msra.mxu0 %v295
  %377 = vmatpush.bf16.msra.mxu0 %v294
  %378 = vmatmul.bf16.gmra.mxu0 %v80
  %v379 = vpop.f32.mrf.mxu0
  %v380 = vadd.f32 %v366, %v379
  %v381 = vpop.f32.mrf.mxu0
  %v382 = vadd.f32 %v368, %v381
  %383 = vdwg.mxu0
  %384 = vmatpush.bf16.msra.mxu0 %v309
  %385 = vmatpush.bf16.msra.mxu0 %v308
  %386 = vmatpush.bf16.msra.mxu0 %v307
  %387 = vmatpush.bf16.msra.mxu0 %v306
  %388 = vmatpush.bf16.msra.mxu0 %v305
  %389 = vmatpush.bf16.msra.mxu0 %v304
  %390 = vmatpush.bf16.msra.mxu0 %v303
  %391 = vmatpush.bf16.msra.mxu0 %v302
  %392 = vmatmul.bf16.gmra.mxu0 %v81
  %v393 = vpop.f32.mrf.mxu0
  %v394 = vadd.f32 %v380, %v393
  %v395 = vpop.f32.mrf.mxu0
  %v396 = vadd.f32 %v382, %v395
  %397 = vdwg.mxu0
  %398 = vst [vmem:[%s5] sm:$0xff] %v394
  %399 = vst [vmem:[%s5 + $0x8] sm:$0xff] %v396
  // Predicated region
  $region18: #{memotion_forward.1} parent=0 // pred_check
    _
  $region19: #{memotion_forward.1} parent=0 // pred_check_branch
    %401 = sbr.rel (0) target = $region21
  $region20: #{memotion_forward.1} parent=0 // pred_region
    _
  $region21: #{memotion_forward.1} parent=0 // pred_fallthru
    _
  // Predicated region
  $region22: #{memotion_forward.1} parent=0 // pred_check
    _
  $region23: #{memotion_forward.1} parent=0 // pred_check_branch
    %403 = sbr.rel (0) target = $region25
  $region24: #{memotion_forward.1} parent=0 // pred_region
    _
  $region25: #{memotion_forward.1} parent=0 // pred_fallthru
    _

</llo_original>
